<compile_context>
chip_gen: v5e
topology: v5e:2x2
jax: 0.10.0
libtpu: 0.0.40
codegen_flags: <defaults>
</compile_context>

<pallas_src>
import functools

import jax
import jax.numpy as jnp
from jax.experimental import pallas as pl
from jax.experimental.pallas import tpu as pltpu


DROPOUT_P = 0.1
# bits < threshold  ->  drop;  P(drop) = threshold / 2^32 = p
KEEP_THRESHOLD = int(round(DROPOUT_P * (1 << 32)))
LANE = 128       # lane width: all feature dims padded to a multiple of this
TILE_B = 128     # batch tile fed to the MXU per grid step


def _round_up(n, m):
    return (n + m - 1) // m * m


def _pad2(a, rows, cols):
    return jnp.pad(a, ((0, rows - a.shape[0]), (0, cols - a.shape[1])))


def qnet_kernel(bits_ref,                      # (TILE_B, Hp)  uint32 dropout bits
                x_ref,                         # (TILE_B, INp) bf16
                w1_ref, b1_ref,                # (INp, Hp) bf16, (1, Hp) f32
                w2_ref, b2_ref,                # (Hp, Hp)  bf16 (pre-scaled), (1, Hp) f32
                w3_ref, b3_ref,                # (Hp, OUTp) bf16, (1, OUTp) f32
                o_ref):                        # (TILE_B, OUTp) f32
    # --- linear1 + relu (bf16 MXU inputs, f32 accumulation) ---
    a = jnp.dot(x_ref[...], w1_ref[...], preferred_element_type=jnp.float32)
    a = jnp.maximum(a + b1_ref[...], 0.0)

    # --- dropout(p=0.1): integer threshold compare; 1/(1-p) is folded into w2 ---
    keep = bits_ref[...] >= jnp.uint32(KEEP_THRESHOLD)
    a = jnp.where(keep, a, 0.0)

    # --- linear2 + relu ---
    b = jnp.dot(a.astype(jnp.bfloat16), w2_ref[...],
                preferred_element_type=jnp.float32)
    b = jnp.maximum(b + b2_ref[...], 0.0)

    # --- linear3 ---
    out = jnp.dot(b.astype(jnp.bfloat16), w3_ref[...],
                  preferred_element_type=jnp.float32) + b3_ref[...]
    o_ref[...] = out.astype(o_ref.dtype)


def init_params(key, input_size, hidden_size, output_size):
    # weight ~ N(0, 1/sqrt(input_size)), bias = 0   (matches Qnet.__init__weights)
    std = 1.0 / jnp.sqrt(jnp.float32(input_size))
    k1, k2, k3 = jax.random.split(key, 3)
    w1 = jax.random.normal(k1, (input_size, hidden_size), jnp.float32) * std
    w2 = jax.random.normal(k2, (hidden_size, hidden_size), jnp.float32) * std
    w3 = jax.random.normal(k3, (hidden_size, output_size), jnp.float32) * std
    b1 = jnp.zeros((hidden_size,), jnp.float32)
    b2 = jnp.zeros((hidden_size,), jnp.float32)
    b3 = jnp.zeros((output_size,), jnp.float32)
    return w1, b1, w2, b2, w3, b3


def prepare_params(w1, b1, w2, b2, w3, b3):
    """One-time: pad features to lane multiples, fold dropout scale into w2, cast to bf16."""
    in_p = _round_up(w1.shape[0], LANE)
    h_p = _round_up(w1.shape[1], LANE)
    out_p = _round_up(w3.shape[1], LANE)
    scale = 1.0 / (1.0 - DROPOUT_P)
    w1p = _pad2(w1, in_p, h_p).astype(jnp.bfloat16)
    w2p = _pad2(w2 * scale, h_p, h_p).astype(jnp.bfloat16)   # dropout rescale folded in
    w3p = _pad2(w3, h_p, out_p).astype(jnp.bfloat16)
    b1p = _pad2(b1.reshape(1, -1), 1, h_p).astype(jnp.float32)
    b2p = _pad2(b2.reshape(1, -1), 1, h_p).astype(jnp.float32)
    b3p = _pad2(b3.reshape(1, -1), 1, out_p).astype(jnp.float32)
    return w1p, b1p, w2p, b2p, w3p, b3p


@functools.partial(jax.jit, static_argnames=("output_size",))
def qnet_forward(dropout_key, x, w1, b1, w2, b2, w3, b3, *, output_size):
    B, F = x.shape
    in_p, h_p = w1.shape
    out_p = w3.shape[1]
    b_p = _round_up(max(B, 1), TILE_B)

    # Pad batch/features; cast activations to bf16 for the MXU.
    x_p = jnp.zeros((b_p, in_p), jnp.bfloat16).at[:B, :F].set(x.astype(jnp.bfloat16))
    # Fresh dropout bits every call (vary dropout_key per step for training).
    bits = jax.random.bits(dropout_key, (b_p, h_p), dtype=jnp.uint32)

    row = lambda i: (i, 0)   # batch-tiled arrays
    rep = lambda i: (0, 0)   # weights/biases: same block every step -> stay resident

    out = pl.pallas_call(
        qnet_kernel,
        out_shape=jax.ShapeDtypeStruct((b_p, out_p), jnp.float32),
        grid=(b_p // TILE_B,),
        in_specs=[
            pl.BlockSpec((TILE_B, h_p), row),     # dropout bits
            pl.BlockSpec((TILE_B, in_p), row),    # x
            pl.BlockSpec((in_p, h_p), rep),       # w1
            pl.BlockSpec((1, h_p), rep),          # b1
            pl.BlockSpec((h_p, h_p), rep),        # w2 (pre-scaled)
            pl.BlockSpec((1, h_p), rep),          # b2
            pl.BlockSpec((h_p, out_p), rep),      # w3
            pl.BlockSpec((1, out_p), rep),        # b3
        ],
        out_specs=pl.BlockSpec((TILE_B, out_p), row),
        compiler_params=pltpu.CompilerParams(
            dimension_semantics=("parallel",),        # shard batch tiles across TCs (v7x)
            vmem_limit_bytes=48 * 1024 * 1024,        # headroom vs v7x's 64 MiB VMEM
        ),
    )(bits, x_p, w1, b1, w2, b2, w3, b3)

    return out[:B, :output_size]


if __name__ == "__main__":
    batch = 8
    input_size = 16
    hidden_size = 32
    output_size = 4

    key = jax.random.PRNGKey(0)
    kx, kp, kd = jax.random.split(key, 3)
    x = jax.random.normal(kx, (batch, input_size), jnp.float32)

    raw_params = init_params(kp, input_size, hidden_size, output_size)
    params = prepare_params(*raw_params)

    out = qnet_forward(kd, x, *params, output_size=output_size)
    jax.block_until_ready(out)

    assert out.shape == (batch, output_size)
    assert bool(jnp.all(jnp.isfinite(out)))
    print("KERNEL_OK")
</pallas_src>

<mosaic_0001>
module attributes {stable_mosaic.version = 11 : i64} {
  func.func @qnet_kernel(%arg0: i32, %arg1: memref<128x128xi32, #tpu.memory_space<vmem>>, %arg2: memref<128x128xbf16, #tpu.memory_space<vmem>>, %arg3: memref<128x128xbf16, #tpu.memory_space<vmem>>, %arg4: memref<1x128xf32, #tpu.memory_space<vmem>>, %arg5: memref<128x128xbf16, #tpu.memory_space<vmem>>, %arg6: memref<1x128xf32, #tpu.memory_space<vmem>>, %arg7: memref<128x128xbf16, #tpu.memory_space<vmem>>, %arg8: memref<1x128xf32, #tpu.memory_space<vmem>>, %arg9: memref<128x128xf32, #tpu.memory_space<vmem>>) attributes {dimension_semantics = [#tpu.dimension_semantics<parallel>], iteration_bounds = array<i64: 1>, scalar_prefetch = 0 : i64, scratch_operands = 0 : i64, tpu.core_type = #tpu.core_type<tc>, window_params = [{transform_indices = @transform_0, window_bounds = array<i64: 128, 128>}, {transform_indices = @transform_1, window_bounds = array<i64: 128, 128>}, {pipeline_mode = #tpu.pipeline_mode<synchronous>, transform_indices = @transform_2, window_bounds = array<i64: 128, 128>}, {pipeline_mode = #tpu.pipeline_mode<synchronous>, transform_indices = @transform_3, window_bounds = array<i64: 1, 128>}, {pipeline_mode = #tpu.pipeline_mode<synchronous>, transform_indices = @transform_4, window_bounds = array<i64: 128, 128>}, {pipeline_mode = #tpu.pipeline_mode<synchronous>, transform_indices = @transform_5, window_bounds = array<i64: 1, 128>}, {pipeline_mode = #tpu.pipeline_mode<synchronous>, transform_indices = @transform_6, window_bounds = array<i64: 128, 128>}, {pipeline_mode = #tpu.pipeline_mode<synchronous>, transform_indices = @transform_7, window_bounds = array<i64: 1, 128>}, {transform_indices = @transform_8, window_bounds = array<i64: 128, 128>}]} {
    %c0 = arith.constant 0 : index
    %c0_0 = arith.constant 0 : index
    %0 = vector.load %arg2[%c0, %c0_0] : memref<128x128xbf16, #tpu.memory_space<vmem>>, vector<128x128xbf16>
    %c0_1 = arith.constant 0 : index
    %c0_2 = arith.constant 0 : index
    %1 = vector.load %arg3[%c0_1, %c0_2] : memref<128x128xbf16, #tpu.memory_space<vmem>>, vector<128x128xbf16>
    %cst = arith.constant dense<0.000000e+00> : vector<128x128xf32>
    %2 = tpu.matmul %0, %1, %cst {dimension_numbers = #tpu.dot_dimension_numbers<[1], [0], [0], [1], [0, 0, 1, 1], [], []>} : vector<128x128xbf16>, vector<128x128xbf16>, vector<128x128xf32> -> vector<128x128xf32>
    %c0_3 = arith.constant 0 : index
    %c0_4 = arith.constant 0 : index
    %3 = vector.load %arg4[%c0_3, %c0_4] : memref<1x128xf32, #tpu.memory_space<vmem>>, vector<1x128xf32>
    %4 = vector.broadcast %3 : vector<1x128xf32> to vector<128x128xf32>
    %5 = arith.addf %2, %4 : vector<128x128xf32>
    %cst_5 = arith.constant 0.000000e+00 : f32
    %6 = vector.broadcast %cst_5 : f32 to vector<128x128xf32>
    %7 = arith.maximumf %5, %6 : vector<128x128xf32>
    %c0_6 = arith.constant 0 : index
    %c0_7 = arith.constant 0 : index
    %8 = vector.load %arg1[%c0_6, %c0_7] : memref<128x128xi32, #tpu.memory_space<vmem>>, vector<128x128xi32>
    %c429496730_i32 = arith.constant 429496730 : i32
    %9 = vector.broadcast %c429496730_i32 : i32 to vector<128x128xi32>
    %10 = arith.cmpi uge, %8, %9 : vector<128x128xi32>
    %cst_8 = arith.constant 0.000000e+00 : f32
    %11 = vector.broadcast %cst_8 : f32 to vector<128x128xf32>
    %12 = arith.select %10, %7, %11 : vector<128x128xi1>, vector<128x128xf32>
    %13 = arith.truncf %12 : vector<128x128xf32> to vector<128x128xbf16>
    %c0_9 = arith.constant 0 : index
    %c0_10 = arith.constant 0 : index
    %14 = vector.load %arg5[%c0_9, %c0_10] : memref<128x128xbf16, #tpu.memory_space<vmem>>, vector<128x128xbf16>
    %cst_11 = arith.constant dense<0.000000e+00> : vector<128x128xf32>
    %15 = tpu.matmul %13, %14, %cst_11 {dimension_numbers = #tpu.dot_dimension_numbers<[1], [0], [0], [1], [0, 0, 1, 1], [], []>} : vector<128x128xbf16>, vector<128x128xbf16>, vector<128x128xf32> -> vector<128x128xf32>
    %c0_12 = arith.constant 0 : index
    %c0_13 = arith.constant 0 : index
    %16 = vector.load %arg6[%c0_12, %c0_13] : memref<1x128xf32, #tpu.memory_space<vmem>>, vector<1x128xf32>
    %17 = vector.broadcast %16 : vector<1x128xf32> to vector<128x128xf32>
    %18 = arith.addf %15, %17 : vector<128x128xf32>
    %cst_14 = arith.constant 0.000000e+00 : f32
    %19 = vector.broadcast %cst_14 : f32 to vector<128x128xf32>
    %20 = arith.maximumf %18, %19 : vector<128x128xf32>
    %21 = arith.truncf %20 : vector<128x128xf32> to vector<128x128xbf16>
    %c0_15 = arith.constant 0 : index
    %c0_16 = arith.constant 0 : index
    %22 = vector.load %arg7[%c0_15, %c0_16] : memref<128x128xbf16, #tpu.memory_space<vmem>>, vector<128x128xbf16>
    %cst_17 = arith.constant dense<0.000000e+00> : vector<128x128xf32>
    %23 = tpu.matmul %21, %22, %cst_17 {dimension_numbers = #tpu.dot_dimension_numbers<[1], [0], [0], [1], [0, 0, 1, 1], [], []>} : vector<128x128xbf16>, vector<128x128xbf16>, vector<128x128xf32> -> vector<128x128xf32>
    %c0_18 = arith.constant 0 : index
    %c0_19 = arith.constant 0 : index
    %24 = vector.load %arg8[%c0_18, %c0_19] : memref<1x128xf32, #tpu.memory_space<vmem>>, vector<1x128xf32>
    %25 = vector.broadcast %24 : vector<1x128xf32> to vector<128x128xf32>
    %26 = arith.addf %23, %25 : vector<128x128xf32>
    %c0_20 = arith.constant 0 : index
    %c0_21 = arith.constant 0 : index
    %27 = vector.load %arg9[%c0_20, %c0_21] : memref<128x128xf32, #tpu.memory_space<vmem>>, vector<128x128xf32>
    tpu.vector_store %arg9[%c0_20, %c0_21], %26 {strides = array<i32>} : memref<128x128xf32, #tpu.memory_space<vmem>>, vector<128x128xf32>,
    return
  }
  func.func @transform_0(%arg0: i32) -> (i32, i32) {
    %c0_i32 = arith.constant 0 : i32
    %c0_i32_0 = arith.constant 0 : i32
    return %arg0, %c0_i32 : i32, i32
  }
  func.func @transform_1(%arg0: i32) -> (i32, i32) {
    %c0_i32 = arith.constant 0 : i32
    %c0_i32_0 = arith.constant 0 : i32
    return %arg0, %c0_i32 : i32, i32
  }
  func.func @transform_2(%arg0: i32) -> (i32, i32) {
    %c0_i32 = arith.constant 0 : i32
    %c0_i32_0 = arith.constant 0 : i32
    %c0_i32_1 = arith.constant 0 : i32
    return %c0_i32, %c0_i32_0 : i32, i32
  }
  func.func @transform_3(%arg0: i32) -> (i32, i32) {
    %c0_i32 = arith.constant 0 : i32
    %c0_i32_0 = arith.constant 0 : i32
    %c0_i32_1 = arith.constant 0 : i32
    return %c0_i32, %c0_i32_0 : i32, i32
  }
  func.func @transform_4(%arg0: i32) -> (i32, i32) {
    %c0_i32 = arith.constant 0 : i32
    %c0_i32_0 = arith.constant 0 : i32
    %c0_i32_1 = arith.constant 0 : i32
    return %c0_i32, %c0_i32_0 : i32, i32
  }
  func.func @transform_5(%arg0: i32) -> (i32, i32) {
    %c0_i32 = arith.constant 0 : i32
    %c0_i32_0 = arith.constant 0 : i32
    %c0_i32_1 = arith.constant 0 : i32
    return %c0_i32, %c0_i32_0 : i32, i32
  }
  func.func @transform_6(%arg0: i32) -> (i32, i32) {
    %c0_i32 = arith.constant 0 : i32
    %c0_i32_0 = arith.constant 0 : i32
    %c0_i32_1 = arith.constant 0 : i32
    return %c0_i32, %c0_i32_0 : i32, i32
  }
  func.func @transform_7(%arg0: i32) -> (i32, i32) {
    %c0_i32 = arith.constant 0 : i32
    %c0_i32_0 = arith.constant 0 : i32
    %c0_i32_1 = arith.constant 0 : i32
    return %c0_i32, %c0_i32_0 : i32, i32
  }
  func.func @transform_8(%arg0: i32) -> (i32, i32) {
    %c0_i32 = arith.constant 0 : i32
    %c0_i32_0 = arith.constant 0 : i32
    return %arg0, %c0_i32 : i32, i32
  }
}

</mosaic_0001>

<llo_original>
// kernel: qnet_forward.1
$region0: #{qnet_forward.1}
  #allocation0 [shape = 'u32[]', space=smem, size = 0x4, offset = 0x4, fixed_abs, tag = 'smem constant byte address 0x4 - core index']
  #allocation1 [shape = 'u32[72,128]{1,0:T(1,128)}', space=vmem, size = 0x9000, scoped, tag = 'internal scratch']
  %s0 = inlined_call_operand.vmem [shape: u32[128,128], index: 0, kind: input, shape index: {}]
  %s1 = inlined_call_operand.vmem [shape: bf16[128,128], index: 1, kind: input, shape index: {}]
  %s2 = inlined_call_operand.vmem [shape: bf16[128,128], index: 2, kind: input, shape index: {}]
  %s3 = inlined_call_operand.vmem [shape: f32[1,128], index: 3, kind: input, shape index: {}]
  %s4 = inlined_call_operand.vmem [shape: bf16[128,128], index: 4, kind: input, shape index: {}]
  %s5 = inlined_call_operand.vmem [shape: f32[1,128], index: 5, kind: input, shape index: {}]
  %s6 = inlined_call_operand.vmem [shape: bf16[128,128], index: 6, kind: input, shape index: {}]
  %s7 = inlined_call_operand.vmem [shape: f32[1,128], index: 7, kind: input, shape index: {}]
  %s8 = inlined_call_operand.vmem [shape: f32[128,128], index: 8, kind: output, shape index: {}]
  %s9 = sld [smem:[#allocation0]]
  $region42: #{qnet_forward.1} parent=0
    _
  %s11 = ssub.s32 1, %s9
  %s12 = scalar_select 0, %s11, %s9
  // Predicated region
  $region2: #{qnet_forward.1} parent=0 // pred_check
    _
  $region3: #{qnet_forward.1} parent=0 // pred_check_branch
    %14 = sbr.rel (0) target = $region5
  $region4: #{qnet_forward.1} parent=0 // pred_region
    _
  $region5: #{qnet_forward.1} parent=0 // pred_fallthru
    _
  // Predicated region
  $region6: #{qnet_forward.1} parent=0 // pred_check
    _
  $region7: #{qnet_forward.1} parent=0 // pred_check_branch
    %16 = sbr.rel (0) target = $region9
  $region8: #{qnet_forward.1} parent=0 // pred_region
    _
  $region9: #{qnet_forward.1} parent=0 // pred_fallthru
    _
  // Predicated region
  $region10: #{qnet_forward.1} parent=0 // pred_check
    _
  $region11: #{qnet_forward.1} parent=0 // pred_check_branch
    %18 = sbr.rel (0) target = $region13
  $region12: #{qnet_forward.1} parent=0 // pred_region
    _
  $region13: #{qnet_forward.1} parent=0 // pred_fallthru
    _
  // Predicated region
  $region14: #{qnet_forward.1} parent=0 // pred_check
    _
  $region15: #{qnet_forward.1} parent=0 // pred_check_branch
    %20 = sbr.rel (0) target = $region17
  $region16: #{qnet_forward.1} parent=0 // pred_region
    _
  $region17: #{qnet_forward.1} parent=0 // pred_fallthru
    _
  // Predicated region
  $region18: #{qnet_forward.1} parent=0 // pred_check
    _
  $region19: #{qnet_forward.1} parent=0 // pred_check_branch
    %22 = sbr.rel (0) target = $region21
  $region20: #{qnet_forward.1} parent=0 // pred_region
    _
  $region21: #{qnet_forward.1} parent=0 // pred_fallthru
    _
  // Predicated region
  $region22: #{qnet_forward.1} parent=0 // pred_check
    _
  $region23: #{qnet_forward.1} parent=0 // pred_check_branch
    %24 = sbr.rel (0) target = $region25
  $region24: #{qnet_forward.1} parent=0 // pred_region
    _
  $region25: #{qnet_forward.1} parent=0 // pred_fallthru
    _
  // Predicated region
  $region26: #{qnet_forward.1} parent=0 // pred_check
    _
  $region27: #{qnet_forward.1} parent=0 // pred_check_branch
    %26 = sbr.rel (0) target = $region29
  $region28: #{qnet_forward.1} parent=0 // pred_region
    _
  $region29: #{qnet_forward.1} parent=0 // pred_fallthru
    _
  // Predicated region
  $region30: #{qnet_forward.1} parent=0 // pred_check
    _
  $region31: #{qnet_forward.1} parent=0 // pred_check_branch
    %28 = sbr.rel (0) target = $region33
  $region32: #{qnet_forward.1} parent=0 // pred_region
    _
  $region33: #{qnet_forward.1} parent=0 // pred_fallthru
    _
  %v29 = vld [vmem:[%s1] sm:$0xf]
  %v30 = vld [vmem:[%s1 + $0x4] sm:$0xf]
  %v31 = vld [vmem:[%s1 + $0x8] sm:$0xf]
  %v32 = vld [vmem:[%s1 + $0xc] sm:$0xf]
  %v33 = vld [vmem:[%s1 + $0x10] sm:$0xf]
  %v34 = vld [vmem:[%s1 + $0x14] sm:$0xf]
  %v35 = vld [vmem:[%s1 + $0x18] sm:$0xf]
  %v36 = vld [vmem:[%s1 + $0x1c] sm:$0xf]
  %v37 = vld [vmem:[%s1 + $0x20] sm:$0xf]
  %v38 = vld [vmem:[%s1 + $0x24] sm:$0xf]
  %v39 = vld [vmem:[%s1 + $0x28] sm:$0xf]
  %v40 = vld [vmem:[%s1 + $0x2c] sm:$0xf]
  %v41 = vld [vmem:[%s1 + $0x30] sm:$0xf]
  %v42 = vld [vmem:[%s1 + $0x34] sm:$0xf]
  %v43 = vld [vmem:[%s1 + $0x38] sm:$0xf]
  %v44 = vld [vmem:[%s1 + $0x3c] sm:$0xf]
  %v45 = vld [vmem:[%s2] sm:$0xf]
  %v46 = vld [vmem:[%s2 + $0x4] sm:$0xf]
  %v47 = vld [vmem:[%s2 + $0x8] sm:$0xf]
  %v48 = vld [vmem:[%s2 + $0xc] sm:$0xf]
  %v49 = vld [vmem:[%s2 + $0x10] sm:$0xf]
  %v50 = vld [vmem:[%s2 + $0x14] sm:$0xf]
  %v51 = vld [vmem:[%s2 + $0x18] sm:$0xf]
  %v52 = vld [vmem:[%s2 + $0x1c] sm:$0xf]
  %v53 = vld [vmem:[%s2 + $0x20] sm:$0xf]
  %v54 = vld [vmem:[%s2 + $0x24] sm:$0xf]
  %v55 = vld [vmem:[%s2 + $0x28] sm:$0xf]
  %v56 = vld [vmem:[%s2 + $0x2c] sm:$0xf]
  %v57 = vld [vmem:[%s2 + $0x30] sm:$0xf]
  %v58 = vld [vmem:[%s2 + $0x34] sm:$0xf]
  %v59 = vld [vmem:[%s2 + $0x38] sm:$0xf]
  %v60 = vld [vmem:[%s2 + $0x3c] sm:$0xf]
  %v61 = vld [vmem:[%s3] sm:$0x1]
  %v63 = vperm.slane %v61, 0
  %v81 = vunpack.c.l.b16 %v29
  %v82 = vunpack.c.l.b16 %v30
  %v83 = vunpack.c.l.b16 %v31
  %v84 = vunpack.c.l.b16 %v32
  %v85 = vunpack.c.l.b16 %v33
  %v86 = vunpack.c.l.b16 %v34
  %v87 = vunpack.c.l.b16 %v35
  %v88 = vunpack.c.l.b16 %v36
  %v89 = vunpack.c.l.b16 %v37
  %v90 = vunpack.c.l.b16 %v38
  %v91 = vunpack.c.l.b16 %v39
  %v92 = vunpack.c.l.b16 %v40
  %v93 = vunpack.c.l.b16 %v41
  %v94 = vunpack.c.l.b16 %v42
  %v95 = vunpack.c.l.b16 %v43
  %v96 = vunpack.c.l.b16 %v44
  %v97 = vpack.c.b16 %v82, %v81
  %v98 = vpack.c.b16 %v84, %v83
  %v99 = vpack.c.b16 %v86, %v85
  %v100 = vpack.c.b16 %v88, %v87
  %v101 = vpack.c.b16 %v90, %v89
  %v102 = vpack.c.b16 %v92, %v91
  %v103 = vpack.c.b16 %v94, %v93
  %v104 = vpack.c.b16 %v96, %v95
  %v129 = vunpack.c.l.b16 %v45
  %v130 = vunpack.c.l.b16 %v46
  %v131 = vunpack.c.l.b16 %v47
  %v132 = vunpack.c.l.b16 %v48
  %v133 = vunpack.c.l.b16 %v49
  %v134 = vunpack.c.l.b16 %v50
  %v135 = vunpack.c.l.b16 %v51
  %v136 = vunpack.c.l.b16 %v52
  %v137 = vunpack.c.l.b16 %v53
  %v138 = vunpack.c.l.b16 %v54
  %v139 = vunpack.c.l.b16 %v55
  %v140 = vunpack.c.l.b16 %v56
  %v141 = vunpack.c.l.b16 %v57
  %v142 = vunpack.c.l.b16 %v58
  %v143 = vunpack.c.l.b16 %v59
  %v144 = vunpack.c.l.b16 %v60
  %v145 = vpack.c.b16 %v130, %v129
  %v146 = vpack.c.b16 %v132, %v131
  %v147 = vpack.c.b16 %v134, %v133
  %v148 = vpack.c.b16 %v136, %v135
  %v149 = vpack.c.b16 %v138, %v137
  %v150 = vpack.c.b16 %v140, %v139
  %v151 = vpack.c.b16 %v142, %v141
  %v152 = vpack.c.b16 %v144, %v143
  %161 = vmatpush.bf16.msra.mxu0 %v152
  %162 = vmatpush.bf16.msra.mxu0 %v151
  %163 = vmatpush.bf16.msra.mxu0 %v150
  %164 = vmatpush.bf16.msra.mxu0 %v149
  %165 = vmatpush.bf16.msra.mxu0 %v148
  %166 = vmatpush.bf16.msra.mxu0 %v147
  %167 = vmatpush.bf16.msra.mxu0 %v146
  %168 = vmatpush.bf16.msra.mxu0 %v145
  %169 = vmatmul.bf16.gmra.mxu0 %v97
  %v170 = vpop.f32.mrf.mxu0
  %v171 = vadd.f32 %v63, %v170
  %v172 = vpop.f32.mrf.mxu0
  %v173 = vadd.f32 %v63, %v172
  %174 = vmatmul.bf16.gmra.mxu0 %v98
  %v175 = vpop.f32.mrf.mxu0
  %v176 = vadd.f32 %v63, %v175
  %v177 = vpop.f32.mrf.mxu0
  %v178 = vadd.f32 %v63, %v177
  %179 = vmatmul.bf16.gmra.mxu0 %v99
  %v180 = vpop.f32.mrf.mxu0
  %v181 = vadd.f32 %v63, %v180
  %v182 = vpop.f32.mrf.mxu0
  %v183 = vadd.f32 %v63, %v182
  %184 = vmatmul.bf16.gmra.mxu0 %v100
  %v185 = vpop.f32.mrf.mxu0
  %v186 = vadd.f32 %v63, %v185
  %v187 = vpop.f32.mrf.mxu0
  %v188 = vadd.f32 %v63, %v187
  %189 = vmatmul.bf16.gmra.mxu0 %v101
  %v190 = vpop.f32.mrf.mxu0
  %v191 = vadd.f32 %v63, %v190
  %v192 = vpop.f32.mrf.mxu0
  %v193 = vadd.f32 %v63, %v192
  %194 = vmatmul.bf16.gmra.mxu0 %v102
  %v195 = vpop.f32.mrf.mxu0
  %v196 = vadd.f32 %v63, %v195
  %v197 = vpop.f32.mrf.mxu0
  %v198 = vadd.f32 %v63, %v197
  %199 = vmatmul.bf16.gmra.mxu0 %v103
  %v200 = vpop.f32.mrf.mxu0
  %v201 = vadd.f32 %v63, %v200
  %v202 = vpop.f32.mrf.mxu0
  %v203 = vadd.f32 %v63, %v202
  %204 = vmatmul.bf16.gmra.mxu0 %v104
  %v205 = vpop.f32.mrf.mxu0
  %v206 = vadd.f32 %v63, %v205
  %v207 = vpop.f32.mrf.mxu0
  %v208 = vadd.f32 %v63, %v207
  %209 = vdwg.mxu0
  %v210 = vmax.f32 %v171, 0.0
  %v211 = vmax.f32 %v173, 0.0
  %v212 = vmax.f32 %v176, 0.0
  %v213 = vmax.f32 %v178, 0.0
  %v214 = vmax.f32 %v181, 0.0
  %v215 = vmax.f32 %v183, 0.0
  %v216 = vmax.f32 %v186, 0.0
  %v217 = vmax.f32 %v188, 0.0
  %v218 = vmax.f32 %v191, 0.0
  %v219 = vmax.f32 %v193, 0.0
  %v220 = vmax.f32 %v196, 0.0
  %v221 = vmax.f32 %v198, 0.0
  %v222 = vmax.f32 %v201, 0.0
  %v223 = vmax.f32 %v203, 0.0
  %v224 = vmax.f32 %v206, 0.0
  %v225 = vmax.f32 %v208, 0.0
  %v226 = vld [vmem:[%s0] sm:$0xff]
  %v227 = vld [vmem:[%s0 + $0x8] sm:$0xff]
  %v228 = vld [vmem:[%s0 + $0x10] sm:$0xff]
  %v229 = vld [vmem:[%s0 + $0x18] sm:$0xff]
  %v230 = vld [vmem:[%s0 + $0x20] sm:$0xff]
  %v231 = vld [vmem:[%s0 + $0x28] sm:$0xff]
  %v232 = vld [vmem:[%s0 + $0x30] sm:$0xff]
  %v233 = vld [vmem:[%s0 + $0x38] sm:$0xff]
  %v234 = vld [vmem:[%s0 + $0x40] sm:$0xff]
  %v235 = vld [vmem:[%s0 + $0x48] sm:$0xff]
  %v236 = vld [vmem:[%s0 + $0x50] sm:$0xff]
  %v237 = vld [vmem:[%s0 + $0x58] sm:$0xff]
  %v238 = vld [vmem:[%s0 + $0x60] sm:$0xff]
  %v239 = vld [vmem:[%s0 + $0x68] sm:$0xff]
  %v240 = vld [vmem:[%s0 + $0x70] sm:$0xff]
  %v241 = vld [vmem:[%s0 + $0x78] sm:$0xff]
  %v242 = vadd.s32 %v226, 2147483648
  %vm244 = vcmp.ge.s32.totalorder %v242, 2576980378
  %v245 = vadd.s32 %v227, 2147483648
  %vm247 = vcmp.ge.s32.totalorder %v245, 2576980378
  %v248 = vadd.s32 %v228, 2147483648
  %vm250 = vcmp.ge.s32.totalorder %v248, 2576980378
  %v251 = vadd.s32 %v229, 2147483648
  %vm253 = vcmp.ge.s32.totalorder %v251, 2576980378
  %v254 = vadd.s32 %v230, 2147483648
  %vm256 = vcmp.ge.s32.totalorder %v254, 2576980378
  %v257 = vadd.s32 %v231, 2147483648
  %vm259 = vcmp.ge.s32.totalorder %v257, 2576980378
  %v260 = vadd.s32 %v232, 2147483648
  %vm262 = vcmp.ge.s32.totalorder %v260, 2576980378
  %v263 = vadd.s32 %v233, 2147483648
  %vm265 = vcmp.ge.s32.totalorder %v263, 2576980378
  %v266 = vadd.s32 %v234, 2147483648
  %vm268 = vcmp.ge.s32.totalorder %v266, 2576980378
  %v269 = vadd.s32 %v235, 2147483648
  %vm271 = vcmp.ge.s32.totalorder %v269, 2576980378
  %v272 = vadd.s32 %v236, 2147483648
  %vm274 = vcmp.ge.s32.totalorder %v272, 2576980378
  %v275 = vadd.s32 %v237, 2147483648
  %vm277 = vcmp.ge.s32.totalorder %v275, 2576980378
  %v278 = vadd.s32 %v238, 2147483648
  %vm280 = vcmp.ge.s32.totalorder %v278, 2576980378
  %v281 = vadd.s32 %v239, 2147483648
  %vm283 = vcmp.ge.s32.totalorder %v281, 2576980378
  %v284 = vadd.s32 %v240, 2147483648
  %vm286 = vcmp.ge.s32.totalorder %v284, 2576980378
  %v287 = vadd.s32 %v241, 2147483648
  %vm289 = vcmp.ge.s32.totalorder %v287, 2576980378
  %v290 = vsel %vm244, %v210, 0.0
  %v291 = vsel %vm247, %v211, 0.0
  %v292 = vsel %vm250, %v212, 0.0
  %v293 = vsel %vm253, %v213, 0.0
  %v294 = vsel %vm256, %v214, 0.0
  %v295 = vsel %vm259, %v215, 0.0
  %v296 = vsel %vm262, %v216, 0.0
  %v297 = vsel %vm265, %v217, 0.0
  %v298 = vsel %vm268, %v218, 0.0
  %v299 = vsel %vm271, %v219, 0.0
  %v300 = vsel %vm274, %v220, 0.0
  %v301 = vsel %vm277, %v221, 0.0
  %v302 = vsel %vm280, %v222, 0.0
  %v303 = vsel %vm283, %v223, 0.0
  %v304 = vsel %vm286, %v224, 0.0
  %v305 = vsel %vm289, %v225, 0.0
  %v306 = vpack.c.bf16 %v291, %v290
  %v307 = vpack.c.bf16 %v293, %v292
  %v308 = vpack.c.bf16 %v295, %v294
  %v309 = vpack.c.bf16 %v297, %v296
  %v310 = vpack.c.bf16 %v299, %v298
  %v311 = vpack.c.bf16 %v301, %v300
  %v312 = vpack.c.bf16 %v303, %v302
  %v313 = vpack.c.bf16 %v305, %v304
  %v314 = vld [vmem:[%s4] sm:$0xf]
  %v315 = vld [vmem:[%s4 + $0x4] sm:$0xf]
  %v316 = vld [vmem:[%s4 + $0x8] sm:$0xf]
  %v317 = vld [vmem:[%s4 + $0xc] sm:$0xf]
  %v318 = vld [vmem:[%s4 + $0x10] sm:$0xf]
  %v319 = vld [vmem:[%s4 + $0x14] sm:$0xf]
  %v320 = vld [vmem:[%s4 + $0x18] sm:$0xf]
  %v321 = vld [vmem:[%s4 + $0x1c] sm:$0xf]
  %v322 = vld [vmem:[%s4 + $0x20] sm:$0xf]
  %v323 = vld [vmem:[%s4 + $0x24] sm:$0xf]
  %v324 = vld [vmem:[%s4 + $0x28] sm:$0xf]
  %v325 = vld [vmem:[%s4 + $0x2c] sm:$0xf]
  %v326 = vld [vmem:[%s4 + $0x30] sm:$0xf]
  %v327 = vld [vmem:[%s4 + $0x34] sm:$0xf]
  %v328 = vld [vmem:[%s4 + $0x38] sm:$0xf]
  %v329 = vld [vmem:[%s4 + $0x3c] sm:$0xf]
  %v330 = vld [vmem:[%s5] sm:$0x1]
  %v332 = vperm.slane %v330, 0
  %v350 = vunpack.c.l.b16 %v314
  %v351 = vunpack.c.l.b16 %v315
  %v352 = vunpack.c.l.b16 %v316
  %v353 = vunpack.c.l.b16 %v317
  %v354 = vunpack.c.l.b16 %v318
  %v355 = vunpack.c.l.b16 %v319
  %v356 = vunpack.c.l.b16 %v320
  %v357 = vunpack.c.l.b16 %v321
  %v358 = vunpack.c.l.b16 %v322
  %v359 = vunpack.c.l.b16 %v323
  %v360 = vunpack.c.l.b16 %v324
  %v361 = vunpack.c.l.b16 %v325
  %v362 = vunpack.c.l.b16 %v326
  %v363 = vunpack.c.l.b16 %v327
  %v364 = vunpack.c.l.b16 %v328
  %v365 = vunpack.c.l.b16 %v329
  %v366 = vpack.c.b16 %v351, %v350
  %v367 = vpack.c.b16 %v353, %v352
  %v368 = vpack.c.b16 %v355, %v354
  %v369 = vpack.c.b16 %v357, %v356
  %v370 = vpack.c.b16 %v359, %v358
  %v371 = vpack.c.b16 %v361, %v360
  %v372 = vpack.c.b16 %v363, %v362
  %v373 = vpack.c.b16 %v365, %v364
  %382 = vmatpush.bf16.msra.mxu0 %v373
  %383 = vmatpush.bf16.msra.mxu0 %v372
  %384 = vmatpush.bf16.msra.mxu0 %v371
  %385 = vmatpush.bf16.msra.mxu0 %v370
  %386 = vmatpush.bf16.msra.mxu0 %v369
  %387 = vmatpush.bf16.msra.mxu0 %v368
  %388 = vmatpush.bf16.msra.mxu0 %v367
  %389 = vmatpush.bf16.msra.mxu0 %v366
  %390 = vmatmul.bf16.gmra.mxu0 %v306
  %v391 = vpop.f32.mrf.mxu0
  %v392 = vadd.f32 %v332, %v391
  %v393 = vpop.f32.mrf.mxu0
  %v394 = vadd.f32 %v332, %v393
  %395 = vmatmul.bf16.gmra.mxu0 %v307
  %v396 = vpop.f32.mrf.mxu0
  %v397 = vadd.f32 %v332, %v396
  %v398 = vpop.f32.mrf.mxu0
  %v399 = vadd.f32 %v332, %v398
  %400 = vmatmul.bf16.gmra.mxu0 %v308
  %v401 = vpop.f32.mrf.mxu0
  %v402 = vadd.f32 %v332, %v401
  %v403 = vpop.f32.mrf.mxu0
  %v404 = vadd.f32 %v332, %v403
  %405 = vmatmul.bf16.gmra.mxu0 %v309
  %v406 = vpop.f32.mrf.mxu0
  %v407 = vadd.f32 %v332, %v406
  %v408 = vpop.f32.mrf.mxu0
  %v409 = vadd.f32 %v332, %v408
  %410 = vmatmul.bf16.gmra.mxu0 %v310
  %v411 = vpop.f32.mrf.mxu0
  %v412 = vadd.f32 %v332, %v411
  %v413 = vpop.f32.mrf.mxu0
  %v414 = vadd.f32 %v332, %v413
  %415 = vmatmul.bf16.gmra.mxu0 %v311
  %v416 = vpop.f32.mrf.mxu0
  %v417 = vadd.f32 %v332, %v416
  %v418 = vpop.f32.mrf.mxu0
  %v419 = vadd.f32 %v332, %v418
  %420 = vmatmul.bf16.gmra.mxu0 %v312
  %v421 = vpop.f32.mrf.mxu0
  %v422 = vadd.f32 %v332, %v421
  %v423 = vpop.f32.mrf.mxu0
  %v424 = vadd.f32 %v332, %v423
  %425 = vmatmul.bf16.gmra.mxu0 %v313
  %v426 = vpop.f32.mrf.mxu0
  %v427 = vadd.f32 %v332, %v426
  %v428 = vpop.f32.mrf.mxu0
  %v429 = vadd.f32 %v332, %v428
  %430 = vdwg.mxu0
  %v431 = vmax.f32 %v392, 0.0
  %v432 = vmax.f32 %v394, 0.0
  %v433 = vmax.f32 %v397, 0.0
  %v434 = vmax.f32 %v399, 0.0
  %v435 = vmax.f32 %v402, 0.0
  %v436 = vmax.f32 %v404, 0.0
  %v437 = vmax.f32 %v407, 0.0
  %v438 = vmax.f32 %v409, 0.0
  %v439 = vmax.f32 %v412, 0.0
  %v440 = vmax.f32 %v414, 0.0
  %v441 = vmax.f32 %v417, 0.0
  %v442 = vmax.f32 %v419, 0.0
  %v443 = vmax.f32 %v422, 0.0
  %v444 = vmax.f32 %v424, 0.0
  %v445 = vmax.f32 %v427, 0.0
  %v446 = vmax.f32 %v429, 0.0
  %v447 = vpack.c.bf16 %v432, %v431
  %v448 = vpack.c.bf16 %v434, %v433
  %v449 = vpack.c.bf16 %v436, %v435
  %v450 = vpack.c.bf16 %v438, %v437
  %v451 = vpack.c.bf16 %v440, %v439
  %v452 = vpack.c.bf16 %v442, %v441
  %v453 = vpack.c.bf16 %v444, %v443
  %v454 = vpack.c.bf16 %v446, %v445
  %v455 = vld [vmem:[%s6] sm:$0xf]
  %v456 = vld [vmem:[%s6 + $0x4] sm:$0xf]
  %v457 = vld [vmem:[%s6 + $0x8] sm:$0xf]
  %v458 = vld [vmem:[%s6 + $0xc] sm:$0xf]
  %v459 = vld [vmem:[%s6 + $0x10] sm:$0xf]
  %v460 = vld [vmem:[%s6 + $0x14] sm:$0xf]
  %v461 = vld [vmem:[%s6 + $0x18] sm:$0xf]
  %v462 = vld [vmem:[%s6 + $0x1c] sm:$0xf]
  %v463 = vld [vmem:[%s6 + $0x20] sm:$0xf]
  %v464 = vld [vmem:[%s6 + $0x24] sm:$0xf]
  %v465 = vld [vmem:[%s6 + $0x28] sm:$0xf]
  %v466 = vld [vmem:[%s6 + $0x2c] sm:$0xf]
  %v467 = vld [vmem:[%s6 + $0x30] sm:$0xf]
  %v468 = vld [vmem:[%s6 + $0x34] sm:$0xf]
  %v469 = vld [vmem:[%s6 + $0x38] sm:$0xf]
  %v470 = vld [vmem:[%s6 + $0x3c] sm:$0xf]
  %v471 = vld [vmem:[%s7] sm:$0x1]
  %v473 = vperm.slane %v471, 0
  %v491 = vunpack.c.l.b16 %v455
  %v492 = vunpack.c.l.b16 %v456
  %v493 = vunpack.c.l.b16 %v457
  %v494 = vunpack.c.l.b16 %v458
  %v495 = vunpack.c.l.b16 %v459
  %v496 = vunpack.c.l.b16 %v460
  %v497 = vunpack.c.l.b16 %v461
  %v498 = vunpack.c.l.b16 %v462
  %v499 = vunpack.c.l.b16 %v463
  %v500 = vunpack.c.l.b16 %v464
  %v501 = vunpack.c.l.b16 %v465
  %v502 = vunpack.c.l.b16 %v466
  %v503 = vunpack.c.l.b16 %v467
  %v504 = vunpack.c.l.b16 %v468
  %v505 = vunpack.c.l.b16 %v469
  %v506 = vunpack.c.l.b16 %v470
  %v507 = vpack.c.b16 %v492, %v491
  %v508 = vpack.c.b16 %v494, %v493
  %v509 = vpack.c.b16 %v496, %v495
  %v510 = vpack.c.b16 %v498, %v497
  %v511 = vpack.c.b16 %v500, %v499
  %v512 = vpack.c.b16 %v502, %v501
  %v513 = vpack.c.b16 %v504, %v503
  %v514 = vpack.c.b16 %v506, %v505
  %523 = vmatpush.bf16.msra.mxu0 %v514
  %524 = vmatpush.bf16.msra.mxu0 %v513
  %525 = vmatpush.bf16.msra.mxu0 %v512
  %526 = vmatpush.bf16.msra.mxu0 %v511
  %527 = vmatpush.bf16.msra.mxu0 %v510
  %528 = vmatpush.bf16.msra.mxu0 %v509
  %529 = vmatpush.bf16.msra.mxu0 %v508
  %530 = vmatpush.bf16.msra.mxu0 %v507
  %531 = vmatmul.bf16.gmra.mxu0 %v447
  %v532 = vpop.f32.mrf.mxu0
  %v533 = vadd.f32 %v473, %v532
  %v534 = vpop.f32.mrf.mxu0
  %v535 = vadd.f32 %v473, %v534
  %536 = vmatmul.bf16.gmra.mxu0 %v448
  %v537 = vpop.f32.mrf.mxu0
  %v538 = vadd.f32 %v473, %v537
  %v539 = vpop.f32.mrf.mxu0
  %v540 = vadd.f32 %v473, %v539
  %541 = vmatmul.bf16.gmra.mxu0 %v449
  %v542 = vpop.f32.mrf.mxu0
  %v543 = vadd.f32 %v473, %v542
  %v544 = vpop.f32.mrf.mxu0
  %v545 = vadd.f32 %v473, %v544
  %546 = vmatmul.bf16.gmra.mxu0 %v450
  %v547 = vpop.f32.mrf.mxu0
  %v548 = vadd.f32 %v473, %v547
  %v549 = vpop.f32.mrf.mxu0
  %v550 = vadd.f32 %v473, %v549
  %551 = vmatmul.bf16.gmra.mxu0 %v451
  %v552 = vpop.f32.mrf.mxu0
  %v553 = vadd.f32 %v473, %v552
  %v554 = vpop.f32.mrf.mxu0
  %v555 = vadd.f32 %v473, %v554
  %556 = vmatmul.bf16.gmra.mxu0 %v452
  %v557 = vpop.f32.mrf.mxu0
  %v558 = vadd.f32 %v473, %v557
  %v559 = vpop.f32.mrf.mxu0
  %v560 = vadd.f32 %v473, %v559
  %561 = vmatmul.bf16.gmra.mxu0 %v453
  %v562 = vpop.f32.mrf.mxu0
  %v563 = vadd.f32 %v473, %v562
  %v564 = vpop.f32.mrf.mxu0
  %v565 = vadd.f32 %v473, %v564
  %566 = vmatmul.bf16.gmra.mxu0 %v454
  %v567 = vpop.f32.mrf.mxu0
  %v568 = vadd.f32 %v473, %v567
  %v569 = vpop.f32.mrf.mxu0
  %v570 = vadd.f32 %v473, %v569
  %571 = vdwg.mxu0
  %572 = vst [vmem:[%s8] sm:$0xff] %v533
  %573 = vst [vmem:[%s8 + $0x8] sm:$0xff] %v535
  %574 = vst [vmem:[%s8 + $0x10] sm:$0xff] %v538
  %575 = vst [vmem:[%s8 + $0x18] sm:$0xff] %v540
  %576 = vst [vmem:[%s8 + $0x20] sm:$0xff] %v543
  %577 = vst [vmem:[%s8 + $0x28] sm:$0xff] %v545
  %578 = vst [vmem:[%s8 + $0x30] sm:$0xff] %v548
  %579 = vst [vmem:[%s8 + $0x38] sm:$0xff] %v550
  %580 = vst [vmem:[%s8 + $0x40] sm:$0xff] %v553
  %581 = vst [vmem:[%s8 + $0x48] sm:$0xff] %v555
  %582 = vst [vmem:[%s8 + $0x50] sm:$0xff] %v558
  %583 = vst [vmem:[%s8 + $0x58] sm:$0xff] %v560
  %584 = vst [vmem:[%s8 + $0x60] sm:$0xff] %v563
  %585 = vst [vmem:[%s8 + $0x68] sm:$0xff] %v565
  %586 = vst [vmem:[%s8 + $0x70] sm:$0xff] %v568
  %587 = vst [vmem:[%s8 + $0x78] sm:$0xff] %v570
  // Predicated region
  $region34: #{qnet_forward.1} parent=0 // pred_check
    _
  $region35: #{qnet_forward.1} parent=0 // pred_check_branch
    %589 = sbr.rel (0) target = $region37
  $region36: #{qnet_forward.1} parent=0 // pred_region
    _
  $region37: #{qnet_forward.1} parent=0 // pred_fallthru
    _
  // Predicated region
  $region38: #{qnet_forward.1} parent=0 // pred_check
    _
  $region39: #{qnet_forward.1} parent=0 // pred_check_branch
    %591 = sbr.rel (0) target = $region41
  $region40: #{qnet_forward.1} parent=0 // pred_region
    _
  $region41: #{qnet_forward.1} parent=0 // pred_fallthru
    _

</llo_original>
